<compile_context>
chip_gen: v5e
topology: v5e:2x2
jax: 0.10.0
libtpu: 0.0.40
codegen_flags: <defaults>
</compile_context>

<pallas_src>
import functools

import jax
import jax.numpy as jnp
from jax.experimental import pallas as pl
from jax.experimental.pallas import tpu as pltpu


def residual_linear_kernel(x_ref, w_ref, b_ref, o_ref, acc_ref):
    """One (M-tile i, N-tile j, K-tile k) step of  o = x @ W + b + x."""
    j = pl.program_id(1)
    k = pl.program_id(2)

    @pl.when(k == 0)
    def _init():
        acc_ref[...] = jnp.zeros_like(acc_ref)

    x_blk = x_ref[...]                                   # (TM, TD), input dtype
    acc_ref[...] += jnp.dot(x_blk, w_ref[...],
                            preferred_element_type=jnp.float32)

    # Residual: x columns [k*TD, (k+1)*TD) coincide with output columns of N-tile j
    # exactly when k == j (W is square, TK == TN).
    @pl.when(k == j)
    def _residual():
        acc_ref[...] += x_blk.astype(jnp.float32)

    @pl.when(k == pl.num_programs(2) - 1)
    def _finalize():
        o_ref[...] = (acc_ref[...] + b_ref[...]).astype(o_ref.dtype)


def _round_up(a, m):
    return (a + m - 1) // m * m


def _pick_d_tile(d):
    """Largest MXU/lane-friendly tile that divides D; otherwise use full D."""
    for t in (512, 256, 128):
        if d >= t and d % t == 0:
            return t
    return d


@functools.partial(jax.jit, static_argnames=("tm_target",))
def residual_linear(x, w, b, *, tm_target=512):
    """x: [B, S, D], w: [D, D], b: [D] -> [B, S, D]   (Residual(Linear)(x))."""
    B, S, D = x.shape
    M = B * S
    x2 = x.reshape(M, D)

    # Sublane multiple for the dtype: 8 (f32), 16 (bf16), 32 (int8/fp8).
    sub = 8 * (4 // x.dtype.itemsize)

    if M >= tm_target:
        TM = tm_target                      # multiple of 256 -> full MXU / sublane tiles
        M_pad = _round_up(M, TM)
    else:
        TM = _round_up(M, sub)              # small-M case: one tile, sublane-aligned
        M_pad = TM
    if M_pad != M:
        x2 = jnp.pad(x2, ((0, M_pad - M), (0, 0)))   # padded rows are discarded below

    TD = _pick_d_tile(D)                    # shared N-tile and K-tile width
    n_d = D // TD
    b2 = b.reshape(1, D)

    grid = (M_pad // TM, n_d, n_d)

    # Aliasing x -> out is only safe when there is a single N/K tile (otherwise an
    # earlier output tile would overwrite x columns still needed by later N tiles).
    io_alias = {0: 0} if n_d == 1 else {}

    out2 = pl.pallas_call(
        residual_linear_kernel,
        out_shape=jax.ShapeDtypeStruct((M_pad, D), x.dtype),
        grid_spec=pltpu.PrefetchScalarGridSpec(
            num_scalar_prefetch=0,
            grid=grid,
            in_specs=[
                pl.BlockSpec((TM, TD), lambda i, j, k: (i, k)),   # x
                pl.BlockSpec((TD, TD), lambda i, j, k: (k, j)),   # W
                pl.BlockSpec((1, TD), lambda i, j, k: (0, j)),    # bias
            ],
            out_specs=pl.BlockSpec((TM, TD), lambda i, j, k: (i, j)),
            scratch_shapes=[pltpu.VMEM((TM, TD), jnp.float32)],   # f32 accumulator
        ),
        compiler_params=pltpu.CompilerParams(
            dimension_semantics=("parallel", "parallel", "arbitrary"),
        ),
        input_output_aliases=io_alias,
    )(x2, w, b2)

    if M_pad != M:
        out2 = out2[:M]
    return out2.reshape(B, S, D)


if __name__ == "__main__":
    key = jax.random.PRNGKey(0)

    # --- small demo shape consistent with the module (single-tile path) ---
    B, S, D = 2, 8, 32
    kx, kw, kb, k2 = jax.random.split(key, 4)
    x = jax.random.normal(kx, (B, S, D), dtype=jnp.float32)
    w = jax.random.normal(kw, (D, D), dtype=jnp.float32) * (1.0 / jnp.sqrt(D))
    b = jax.random.normal(kb, (D,), dtype=jnp.float32) * 0.01

    out = residual_linear(x, w, b)
    jax.block_until_ready(out)
    ref = jnp.einsum("bsd,de->bse", x, w,
                     precision=jax.lax.Precision.HIGHEST) + b + x
    assert jnp.allclose(out, ref, atol=1e-3, rtol=1e-3), "mismatch vs reference (small)"

    # --- modest shape exercising the tiled multi-N/K path (D=384 -> 3x3 D-tiles) ---
    B2, S2, D2 = 2, 64, 384
    ka, kw2, kb2 = jax.random.split(k2, 3)
    xl = jax.random.normal(ka, (B2, S2, D2), dtype=jnp.float32)
    wl = jax.random.normal(kw2, (D2, D2), dtype=jnp.float32) * (1.0 / jnp.sqrt(D2))
    bl = jax.random.normal(kb2, (D2,), dtype=jnp.float32) * 0.01

    outl = residual_linear(xl, wl, bl)
    jax.block_until_ready(outl)
    refl = jnp.einsum("bsd,de->bse", xl, wl,
                      precision=jax.lax.Precision.HIGHEST) + bl + xl
    assert jnp.allclose(outl, refl, atol=1e-2, rtol=1e-2), "mismatch vs reference (tiled)"

    print("KERNEL_OK")
</pallas_src>

<mosaic_0001>
module attributes {stable_mosaic.version = 11 : i64} {
  func.func @residual_linear_kernel(%arg0: i32, %arg1: i32, %arg2: i32, %arg3: memref<16x32xf32, #tpu.memory_space<vmem>>, %arg4: memref<32x32xf32, #tpu.memory_space<vmem>>, %arg5: memref<1x32xf32, #tpu.memory_space<vmem>>, %arg6: memref<16x32xf32, #tpu.memory_space<vmem>>, %arg7: memref<16x32xf32, #tpu.memory_space<vmem>>) attributes {dimension_semantics = [#tpu.dimension_semantics<parallel>, #tpu.dimension_semantics<parallel>, #tpu.dimension_semantics<arbitrary>], iteration_bounds = array<i64: 1, 1, 1>, scalar_prefetch = 0 : i64, scratch_operands = 1 : i64, tpu.core_type = #tpu.core_type<tc>, window_params = [{transform_indices = @transform_0, window_bounds = array<i64: 16, 32>}, {transform_indices = @transform_1, window_bounds = array<i64: 32, 32>}, {transform_indices = @transform_2, window_bounds = array<i64: 1, 32>}, {transform_indices = @transform_3, window_bounds = array<i64: 16, 32>}]} {
    %c0_i32 = arith.constant 0 : i32
    %0 = arith.cmpi eq, %arg2, %c0_i32 : i32
    %1 = arith.extui %0 : i1 to i32
    %c0_i32_0 = arith.constant 0 : i32
    %2 = arith.cmpi ne, %1, %c0_i32_0 : i32
    scf.if %2 {
      %cst_11 = arith.constant 0.000000e+00 : f32
      %15 = vector.broadcast %cst_11 : f32 to vector<16x32xf32>
      %c0_12 = arith.constant 0 : index
      %c0_13 = arith.constant 0 : index
      %16 = vector.load %arg7[%c0_12, %c0_13] : memref<16x32xf32, #tpu.memory_space<vmem>>, vector<16x32xf32>
      tpu.vector_store %arg7[%c0_12, %c0_13], %15 {strides = array<i32>} : memref<16x32xf32, #tpu.memory_space<vmem>>, vector<16x32xf32>,
    } else {
    }
    %c0 = arith.constant 0 : index
    %c0_1 = arith.constant 0 : index
    %3 = vector.load %arg3[%c0, %c0_1] : memref<16x32xf32, #tpu.memory_space<vmem>>, vector<16x32xf32>
    %c0_2 = arith.constant 0 : index
    %c0_3 = arith.constant 0 : index
    %4 = vector.load %arg7[%c0_2, %c0_3] : memref<16x32xf32, #tpu.memory_space<vmem>>, vector<16x32xf32>
    %c0_4 = arith.constant 0 : index
    %c0_5 = arith.constant 0 : index
    %5 = vector.load %arg4[%c0_4, %c0_5] : memref<32x32xf32, #tpu.memory_space<vmem>>, vector<32x32xf32>
    %cst = arith.constant dense<0.000000e+00> : vector<16x32xf32>
    %6 = tpu.matmul %3, %5, %cst {dimension_numbers = #tpu.dot_dimension_numbers<[1], [0], [0], [1], [0, 0, 1, 1], [], []>} : vector<16x32xf32>, vector<32x32xf32>, vector<16x32xf32> -> vector<16x32xf32>
    %7 = arith.addf %4, %6 : vector<16x32xf32>
    %c0_6 = arith.constant 0 : index
    %c0_7 = arith.constant 0 : index
    %8 = vector.load %arg7[%c0_6, %c0_7] : memref<16x32xf32, #tpu.memory_space<vmem>>, vector<16x32xf32>
    tpu.vector_store %arg7[%c0_6, %c0_7], %7 {strides = array<i32>} : memref<16x32xf32, #tpu.memory_space<vmem>>, vector<16x32xf32>,
    %9 = arith.cmpi eq, %arg2, %arg1 : i32
    %10 = arith.extui %9 : i1 to i32
    %c0_i32_8 = arith.constant 0 : i32
    %11 = arith.cmpi ne, %10, %c0_i32_8 : i32
    scf.if %11 {
      %c0_11 = arith.constant 0 : index
      %c0_12 = arith.constant 0 : index
      %15 = vector.load %arg7[%c0_11, %c0_12] : memref<16x32xf32, #tpu.memory_space<vmem>>, vector<16x32xf32>
      %16 = arith.addf %15, %3 : vector<16x32xf32>
      %c0_13 = arith.constant 0 : index
      %c0_14 = arith.constant 0 : index
      %17 = vector.load %arg7[%c0_13, %c0_14] : memref<16x32xf32, #tpu.memory_space<vmem>>, vector<16x32xf32>
      tpu.vector_store %arg7[%c0_13, %c0_14], %16 {strides = array<i32>} : memref<16x32xf32, #tpu.memory_space<vmem>>, vector<16x32xf32>,
    } else {
    }
    %c0_i32_9 = arith.constant 0 : i32
    %12 = arith.cmpi eq, %arg2, %c0_i32_9 : i32
    %13 = arith.extui %12 : i1 to i32
    %c0_i32_10 = arith.constant 0 : i32
    %14 = arith.cmpi ne, %13, %c0_i32_10 : i32
    scf.if %14 {
      %c0_11 = arith.constant 0 : index
      %c0_12 = arith.constant 0 : index
      %15 = vector.load %arg7[%c0_11, %c0_12] : memref<16x32xf32, #tpu.memory_space<vmem>>, vector<16x32xf32>
      %c0_13 = arith.constant 0 : index
      %c0_14 = arith.constant 0 : index
      %16 = vector.load %arg5[%c0_13, %c0_14] : memref<1x32xf32, #tpu.memory_space<vmem>>, vector<1x32xf32>
      %17 = vector.broadcast %16 : vector<1x32xf32> to vector<16x32xf32>
      %18 = arith.addf %15, %17 : vector<16x32xf32>
      %c0_15 = arith.constant 0 : index
      %c0_16 = arith.constant 0 : index
      %19 = vector.load %arg6[%c0_15, %c0_16] : memref<16x32xf32, #tpu.memory_space<vmem>>, vector<16x32xf32>
      tpu.vector_store %arg6[%c0_15, %c0_16], %18 {strides = array<i32>} : memref<16x32xf32, #tpu.memory_space<vmem>>, vector<16x32xf32>,
    } else {
    }
    return
  }
  func.func @transform_0(%arg0: i32, %arg1: i32, %arg2: i32) -> (i32, i32) {
    %c0_i32 = arith.constant 0 : i32
    return %arg0, %arg2 : i32, i32
  }
  func.func @transform_1(%arg0: i32, %arg1: i32, %arg2: i32) -> (i32, i32) {
    %c0_i32 = arith.constant 0 : i32
    return %arg2, %arg1 : i32, i32
  }
  func.func @transform_2(%arg0: i32, %arg1: i32, %arg2: i32) -> (i32, i32) {
    %c0_i32 = arith.constant 0 : i32
    %c0_i32_0 = arith.constant 0 : i32
    return %c0_i32, %arg1 : i32, i32
  }
  func.func @transform_3(%arg0: i32, %arg1: i32, %arg2: i32) -> (i32, i32) {
    %c0_i32 = arith.constant 0 : i32
    return %arg0, %arg1 : i32, i32
  }
}

</mosaic_0001>

<llo_original>
// kernel: residual_linear.1
$region0: #{residual_linear.1}
  #allocation0 [shape = 'u32[]', space=smem, size = 0x4, offset = 0x4, fixed_abs, tag = 'smem constant byte address 0x4 - core index']
  #allocation1 [shape = 'u32[72,128]{1,0:T(1,128)}', space=vmem, size = 0x9000, scoped, tag = 'internal scratch']
  #allocation2 [shape = 'f32[16,32]{1,0:T(8,128)}', space=vmem, size = 0x2000, scoped, tag = 'scratch operand']
  %s0 = inlined_call_operand.vmem [shape: f32[16,32], index: 0, kind: input, shape index: {}, may-alias: {0,3}]
  %s1 = inlined_call_operand.hbm [shape: f32[32,32], index: 1, kind: input, shape index: {}]
  %s2 = inlined_call_operand.vmem [shape: f32[1,32], index: 2, kind: input, shape index: {}]
  %s3 = inlined_call_operand.vmem [shape: f32[16,32], index: 3, kind: output, shape index: {}, may-alias: {0,3}]
  %s4 = sld [smem:[#allocation0]]
  $region38: #{residual_linear.1} parent=0
    _
  %s6 = ssub.s32 1, %s4
  %s7 = scalar_select 0, %s6, %s4
  $region1: #{residual_linear.1} parent=0
    #allocation3 [shape = 'u8[16384]{0}', space=vmem, size = 0x4000, scoped, tag = 'input window, operand 1, single buffered']
    #allocation4 [shape = 's32[1]{0}', space=sflag, size = 0x4, scoped, tag = 'scoped memory for residual_linear.1']
    %8 = vsyncpa [#allocation4], 0
    // Predicated region
    $region2: #{residual_linear.1} parent=1 // pred_check
      _
    $region3: #{residual_linear.1} parent=1 // pred_check_branch
      %10 = sbr.rel (0) target = $region5
    $region4: #{residual_linear.1} parent=1 // pred_region
      _
    $region5: #{residual_linear.1} parent=1 // pred_fallthru
      _
    // Predicated region
    $region6: #{residual_linear.1} parent=1 // pred_check
      _
    $region7: #{residual_linear.1} parent=1 // pred_check_branch
      %12 = sbr.rel (0) target = $region9
    $region8: #{residual_linear.1} parent=1 // pred_region
      %14 = vsyncadd [#allocation4], 0
      %s15 = sshll.u32 %s1, 4
      %s16 = int_to_ptr.hbm [resolvable:$true] %s15
      %s17 = sshll.u32 [#allocation3], 4
      %s18 = int_to_ptr.vmem [resolvable:$true] %s17
      %23 = dma.hbm_to_vmem [thread:$0]  %s16, 512, %s18, [#allocation4], 128, 128, 8
    $region9: #{residual_linear.1} parent=1 // pred_fallthru
      _
    // Predicated region
    $region10: #{residual_linear.1} parent=1 // pred_check
      _
    $region11: #{residual_linear.1} parent=1 // pred_check_branch
      %25 = sbr.rel (0) target = $region13
    $region12: #{residual_linear.1} parent=1 // pred_region
      _
    $region13: #{residual_linear.1} parent=1 // pred_fallthru
      _
    // Predicated region
    $region14: #{residual_linear.1} parent=1 // pred_check
      _
    $region15: #{residual_linear.1} parent=1 // pred_check_branch
      %27 = sbr.rel (0) target = $region17
    $region16: #{residual_linear.1} parent=1 // pred_region
      %29 = dma.done [#allocation4], 512
    $region17: #{residual_linear.1} parent=1 // pred_fallthru
      _
    %p30 = scmp.eq.s32.totalorder 0, 0
    // Predicated region
    $region18: #{residual_linear.1} parent=1 // pred_check
      %p31 = pneg %p30
    $region19: #{residual_linear.1} parent=1 // pred_check_branch
      %33 = sbr.rel (%p31) target = $region21
    $region20: #{residual_linear.1} parent=1 // pred_region
      %vm34 = vcmask 261120
      %35 = vst.msk [vmem:[#allocation2] sm:$0xff] %vm34, 0.0
      %36 = vst.msk [vmem:[#allocation2 + $0x8] sm:$0xff] %vm34, 0.0
    $region21: #{residual_linear.1} parent=1 // pred_fallthru
      _
    %v37 = vld [vmem:[%s0] sm:$0xff]
    %v38 = vld [vmem:[%s0 + $0x8] sm:$0xff]
    %v39 = vld [vmem:[#allocation2] sm:$0xff]
    %v40 = vld [vmem:[#allocation2 + $0x8] sm:$0xff]
    %v41 = vld [vmem:[#allocation3] sm:$0xff]
    %v42 = vld [vmem:[#allocation3 + $0x8] sm:$0xff]
    %v43 = vld [vmem:[#allocation3 + $0x10] sm:$0xff]
    %v44 = vld [vmem:[#allocation3 + $0x18] sm:$0xff]
    %vm45 = vcmask 261120
    %v47 = vsel %vm45, %v37, 0
    %v50 = vsel %vm45, %v38, 0
    %52 = vmatpush.msra.mxu0 0.0
    %53 = vmatpush.msra.mxu0 0.0
    %54 = vmatpush.msra.mxu0 0.0
    %55 = vmatpush.msra.mxu0 0.0
    %56 = vmatpush.msra.mxu0 0.0
    %57 = vmatpush.msra.mxu0 0.0
    %58 = vmatpush.msra.mxu0 0.0
    %59 = vmatpush.msra.mxu0 0.0
    %60 = vmatpush.msra.mxu0 0.0
    %61 = vmatpush.msra.mxu0 0.0
    %62 = vmatpush.msra.mxu0 0.0
    %63 = vmatpush.msra.mxu0 0.0
    %64 = vmatpush.msra.mxu0 %v44
    %65 = vmatpush.msra.mxu0 %v43
    %66 = vmatpush.msra.mxu0 %v42
    %67 = vmatpush.msra.mxu0 %v41
    %68 = vmatmul.f32.gmra.mxu0 %v47
    %v69 = vpop.f32.mrf.mxu0
    %v70 = vadd.f32 0.0, %v69
    %71 = vmatmul.f32.gmra.mxu0 %v50
    %v72 = vpop.f32.mrf.mxu0
    %v73 = vadd.f32 0.0, %v72
    %74 = vdwg.mxu0
    %v75 = vadd.f32 %v39, %v70
    %v76 = vadd.f32 %v40, %v73
    %77 = vst.msk [vmem:[#allocation2] sm:$0xff] %vm45, %v75
    %78 = vst.msk [vmem:[#allocation2 + $0x8] sm:$0xff] %vm45, %v76
    %p79 = scmp.eq.s32.totalorder 0, 0
    // Predicated region
    $region22: #{residual_linear.1} parent=1 // pred_check
      %p80 = pneg %p79
    $region23: #{residual_linear.1} parent=1 // pred_check_branch
      %82 = sbr.rel (%p80) target = $region25
    $region24: #{residual_linear.1} parent=1 // pred_region
      %v83 = vld [vmem:[#allocation2] sm:$0xff]
      %v84 = vld [vmem:[#allocation2 + $0x8] sm:$0xff]
      %v85 = vadd.f32 %v83, %v37
      %v86 = vadd.f32 %v84, %v38
      %87 = vst.msk [vmem:[#allocation2] sm:$0xff] %vm45, %v85
      %88 = vst.msk [vmem:[#allocation2 + $0x8] sm:$0xff] %vm45, %v86
    $region25: #{residual_linear.1} parent=1 // pred_fallthru
      _
    // Predicated region
    $region26: #{residual_linear.1} parent=1 // pred_check
      %p89 = pneg %p30
    $region27: #{residual_linear.1} parent=1 // pred_check_branch
      %91 = sbr.rel (%p89) target = $region29
    $region28: #{residual_linear.1} parent=1 // pred_region
      %v92 = vld [vmem:[#allocation2] sm:$0xff]
      %v93 = vld [vmem:[#allocation2 + $0x8] sm:$0xff]
      %v94 = vld [vmem:[%s2] sm:$0x1]
      %v96 = vperm.slane %v94, 0
      %v98 = vadd.f32 %v92, %v96
      %v99 = vadd.f32 %v93, %v96
      %100 = vst.msk [vmem:[%s3] sm:$0xff] %vm45, %v98
      %101 = vst.msk [vmem:[%s3 + $0x8] sm:$0xff] %vm45, %v99
    $region29: #{residual_linear.1} parent=1 // pred_fallthru
      _
    // Predicated region
    $region30: #{residual_linear.1} parent=1 // pred_check
      _
    $region31: #{residual_linear.1} parent=1 // pred_check_branch
      %103 = sbr.rel (0) target = $region33
    $region32: #{residual_linear.1} parent=1 // pred_region
      _
    $region33: #{residual_linear.1} parent=1 // pred_fallthru
      _
    // Predicated region
    $region34: #{residual_linear.1} parent=1 // pred_check
      _
    $region35: #{residual_linear.1} parent=1 // pred_check_branch
      %105 = sbr.rel (0) target = $region37
    $region36: #{residual_linear.1} parent=1 // pred_region
      _
    $region37: #{residual_linear.1} parent=1 // pred_fallthru
      _
    %106 = vsyncpa [#allocation4], 1

</llo_original>
